<compile_context>
chip_gen: v7x
topology: tpu7x:2x2x1
jax: 0.10.0
libtpu: 0.0.40
codegen_flags: <defaults>
</compile_context>

<pallas_src>
import functools

import jax
import jax.numpy as jnp
from jax.experimental import pallas as pl
from jax.experimental.pallas import tpu as pltpu


def _unpool_kernel(smat_ref, x_ref, o_ref, *, n_chunks, chunk_cols, out_span,
                   tail_start):
    """One grid step: scatter BR (folded) input rows into the output block.

    smat_ref : (chunk_cols, out_span) one-hot scatter matrix, resident across
               grid steps (constant index_map -> DMA'd once).
    x_ref    : (BR, n_chunks * chunk_cols) input rows.
    o_ref    : (BR, out_cols) output rows.
    """
    smat = smat_ref[...]
    for c in range(n_chunks):                         # static unroll
        xc = x_ref[:, c * chunk_cols:(c + 1) * chunk_cols]
        o_ref[:, c * out_span:(c + 1) * out_span] = jnp.dot(
            xc, smat, preferred_element_type=o_ref.dtype)
    if tail_start is not None:
        # Zero tail of each output row (only on the K-chunked wide-W path; the
        # folded paths bake the zeros into the scatter matrix so one matmul
        # writes the whole lane-dense output row).  tail_start and the tail
        # width are multiples of 128 here -> unmasked full-vreg stores.
        o_ref[:, tail_start:] = jnp.zeros(
            (o_ref.shape[0], o_ref.shape[1] - tail_start), dtype=o_ref.dtype)


def _block_rows(n_rows, in_cols, out_cols, itemsize, smat_bytes):
    """Folded rows per grid step, sized against a conservative VMEM budget."""
    def lane_pad(n):
        return ((n + 127) // 128) * 128

    in_b = lane_pad(in_cols) * itemsize
    out_b = lane_pad(out_cols) * itemsize
    # 2x double-buffered input + 2x double-buffered output + ~1x output-sized
    # matmul temporary; the resident scatter matrix is double-buffered too.
    per_row = 2 * in_b + 3 * out_b
    budget = max(26 * 1024 * 1024 - 2 * smat_bytes, 2 * 1024 * 1024)
    br = max(8, budget // per_row)
    if br >= n_rows:
        return n_rows                                  # full axis: always legal
    br = max(32, (br // 32) * 32)                      # sublane tile any dtype
    return min(br, n_rows)


@functools.partial(jax.jit, static_argnames=("stride",))
def unpool(x, stride=2):
    """Equivalent of Unpool(stride).forward(x) for NCHW input x."""
    assert x.ndim == 4
    n, c, h, w = x.shape
    s = int(stride)
    if s == 1:
        return x

    dt = x.dtype
    itemsize = jnp.dtype(dt).itemsize
    r = n * c * h
    out_row = s * s * w              # one input row -> one (s, s*w) output plane

    # --- choose a lane-dense layout --------------------------------------
    if w <= 128 and 128 % w == 0 and r % (128 // w) == 0:
        # Fold k = 128/w rows so the input block is exactly 128 lanes wide and
        # the output block k*s*s*w lanes (multiple of 128).  The block-diagonal
        # scatter matrix also produces the zero regions, so a single matmul
        # (K = 128) writes the whole lane-dense output row.
        k_fold = 128 // w
        n_chunks, chunk_cols = 1, k_fold * w           # chunk_cols == 128
        out_span = k_fold * out_row
        tail_start = None
    elif w % 128 == 0:
        # Wide rows: chunk the contraction at K=128 (bounded MXU work per
        # output element, v5e guard); each chunk writes a lane-aligned
        # 128*s-wide slice, the zero tail is stored separately (aligned).
        k_fold = 1
        n_chunks, chunk_cols = w // 128, 128
        out_span = 128 * s
        tail_start = s * w
    else:
        # Generic fallback for odd widths: single per-row matmul covering the
        # zeros too.  Correct but lane-padded; intended for modest W only.
        k_fold = 1
        n_chunks, chunk_cols = 1, w
        out_span = out_row
        tail_start = None

    r_f = r // k_fold
    in_cols = k_fold * w
    out_cols = k_fold * out_row

    # --- one-hot scatter matrix (built once, kept resident in VMEM) ------
    # TODO(synk): integer dtypes would route this matmul through the MXU too;
    # on v7x (no integer MXU) a VPU interleave path would be needed.
    if tail_start is None:
        rid = jnp.arange(chunk_cols)                   # = k*w + j
        tgt = (rid // w) * out_row + s * (rid % w)     # -> col k*s*s*w + s*j
    else:
        tgt = s * jnp.arange(chunk_cols)               # -> col s*j
    smat = (jnp.arange(out_span)[None, :] == tgt[:, None]).astype(dt)

    smat_bytes = chunk_cols * out_span * itemsize
    br = _block_rows(r_f, in_cols, out_cols, itemsize, smat_bytes)
    grid = (pl.cdiv(r_f, br),)

    x2 = x.reshape(r_f, in_cols)                       # free (row-major identical)

    out2 = pl.pallas_call(
        functools.partial(_unpool_kernel, n_chunks=n_chunks,
                          chunk_cols=chunk_cols, out_span=out_span,
                          tail_start=tail_start),
        out_shape=jax.ShapeDtypeStruct((r_f, out_cols), dt),
        grid_spec=pltpu.PrefetchScalarGridSpec(
            num_scalar_prefetch=0,
            grid=grid,
            in_specs=[
                pl.BlockSpec((chunk_cols, out_span), lambda i: (0, 0)),  # resident
                pl.BlockSpec((br, in_cols), lambda i: (i, 0)),
            ],
            out_specs=pl.BlockSpec((br, out_cols), lambda i: (i, 0)),
        ),
        compiler_params=pltpu.CompilerParams(
            dimension_semantics=("parallel",),
            vmem_limit_bytes=32 * 1024 * 1024,
        ),
        cost_estimate=pl.CostEstimate(
            flops=0, transcendentals=0,
            bytes_accessed=(1 + s * s) * r * w * itemsize),
    )(smat, x2)

    # Free reshape: (r/k, k*s*s*w) row-major == (n, c, s*h, s*w) row-major.
    return out2.reshape(n, c, s * h, s * w)


def _unpool_ref(x, stride=2):
    """Pure-JAX reference for correctness checking."""
    n, c, h, w = x.shape
    out = jnp.zeros((n, c, h, stride, w, stride), dtype=x.dtype)
    out = out.at[:, :, :, 0, :, 0].set(x)
    return out.reshape(n, c, h * stride, w * stride)


if __name__ == "__main__":
    key = jax.random.PRNGKey(0)
    x = jax.random.normal(key, (2, 4, 16, 16), dtype=jnp.float32)

    out = unpool(x, stride=2)
    out = jax.block_until_ready(out)

    ref = _unpool_ref(x, stride=2)
    assert out.shape == (2, 4, 32, 32)
    assert jnp.allclose(out, ref, atol=1e-6), "mismatch vs reference"

    print("KERNEL_OK")
</pallas_src>

<mosaic_0001>
module attributes {stable_mosaic.version = 11 : i64} {
  func.func @_unpool_kernel(%arg0: i32, %arg1: memref<128x512xf32, #tpu.memory_space<vmem>>, %arg2: memref<16x128xf32, #tpu.memory_space<vmem>>, %arg3: memref<16x512xf32, #tpu.memory_space<vmem>>) attributes {dimension_semantics = [#tpu.dimension_semantics<parallel>], iteration_bounds = array<i64: 1>, scalar_prefetch = 0 : i64, scratch_operands = 0 : i64, tpu.core_type = #tpu.core_type<tc>, window_params = [{pipeline_mode = #tpu.pipeline_mode<synchronous>, transform_indices = @transform_0, window_bounds = array<i64: 128, 512>}, {transform_indices = @transform_1, window_bounds = array<i64: 16, 128>}, {transform_indices = @transform_2, window_bounds = array<i64: 16, 512>}]} {
    %c0 = arith.constant 0 : index
    %c0_0 = arith.constant 0 : index
    %0 = vector.load %arg1[%c0, %c0_0] : memref<128x512xf32, #tpu.memory_space<vmem>>, vector<128x512xf32>
    %c0_1 = arith.constant 0 : index
    %c0_2 = arith.constant 0 : index
    %1 = vector.load %arg2[%c0_1, %c0_2] : memref<16x128xf32, #tpu.memory_space<vmem>>, vector<16x128xf32>
    %cst = arith.constant dense<0.000000e+00> : vector<16x512xf32>
    %2 = tpu.matmul %1, %0, %cst {dimension_numbers = #tpu.dot_dimension_numbers<[1], [0], [0], [1], [0, 0, 1, 1], [], []>} : vector<16x128xf32>, vector<128x512xf32>, vector<16x512xf32> -> vector<16x512xf32>
    %c0_3 = arith.constant 0 : index
    %c0_4 = arith.constant 0 : index
    %3 = vector.load %arg3[%c0_3, %c0_4] : memref<16x512xf32, #tpu.memory_space<vmem>>, vector<16x512xf32>
    tpu.vector_store %arg3[%c0_3, %c0_4], %2 {strides = array<i32>} : memref<16x512xf32, #tpu.memory_space<vmem>>, vector<16x512xf32>,
    return
  }
  func.func @transform_0(%arg0: i32) -> (i32, i32) {
    %c0_i32 = arith.constant 0 : i32
    %c0_i32_0 = arith.constant 0 : i32
    %c0_i32_1 = arith.constant 0 : i32
    return %c0_i32, %c0_i32_0 : i32, i32
  }
  func.func @transform_1(%arg0: i32) -> (i32, i32) {
    %c0_i32 = arith.constant 0 : i32
    %c0_i32_0 = arith.constant 0 : i32
    return %arg0, %c0_i32 : i32, i32
  }
  func.func @transform_2(%arg0: i32) -> (i32, i32) {
    %c0_i32 = arith.constant 0 : i32
    %c0_i32_0 = arith.constant 0 : i32
    return %arg0, %c0_i32 : i32, i32
  }
}

</mosaic_0001>

<llo_original>
// kernel: unpool.1
$region0: #{unpool.1}
  #allocation0 [shape = 'u32[]', space=smem, size = 0x4, offset = 0x4, fixed_abs, tag = 'smem constant byte address 0x4 - core index']
  #allocation1 [shape = 'u32[144,128]{1,0:T(1,128)}', space=vmem, size = 0x12000, scoped, tag = 'internal scratch']
  %s0 = inlined_call_operand.vmem [shape: f32[128,512], index: 0, kind: input, shape index: {}]
  %s1 = inlined_call_operand.vmem [shape: f32[16,128], index: 1, kind: input, shape index: {}]
  %s2 = inlined_call_operand.vmem [shape: f32[16,512], index: 2, kind: output, shape index: {}]
  %s3 = sld [smem:[#allocation0]]
  $region18: #{unpool.1} parent=0
    _
  %s5 = ssub.s32 1, %s3
  %s6 = scalar_select 0, %s5, %s3
  // Predicated region
  $region2: #{unpool.1} parent=0 // pred_check
    _
  $region3: #{unpool.1} parent=0 // pred_check_branch
    %8 = sbr.rel (0) target = $region5
  $region4: #{unpool.1} parent=0 // pred_region
    _
  $region5: #{unpool.1} parent=0 // pred_fallthru
    _
  // Predicated region
  $region6: #{unpool.1} parent=0 // pred_check
    _
  $region7: #{unpool.1} parent=0 // pred_check_branch
    %10 = sbr.rel (0) target = $region9
  $region8: #{unpool.1} parent=0 // pred_region
    _
  $region9: #{unpool.1} parent=0 // pred_fallthru
    _
  %v11 = vld [vmem:[%s0] sm:$0xff]
  %v12 = vld [vmem:[%s0 + $0x8] sm:$0xff]
  %v13 = vld [vmem:[%s0 + $0x10] sm:$0xff]
  %v14 = vld [vmem:[%s0 + $0x18] sm:$0xff]
  %v15 = vld [vmem:[%s0 + $0x20] sm:$0xff]
  %v16 = vld [vmem:[%s0 + $0x28] sm:$0xff]
  %v17 = vld [vmem:[%s0 + $0x30] sm:$0xff]
  %v18 = vld [vmem:[%s0 + $0x38] sm:$0xff]
  %v19 = vld [vmem:[%s0 + $0x40] sm:$0xff]
  %v20 = vld [vmem:[%s0 + $0x48] sm:$0xff]
  %v21 = vld [vmem:[%s0 + $0x50] sm:$0xff]
  %v22 = vld [vmem:[%s0 + $0x58] sm:$0xff]
  %v23 = vld [vmem:[%s0 + $0x60] sm:$0xff]
  %v24 = vld [vmem:[%s0 + $0x68] sm:$0xff]
  %v25 = vld [vmem:[%s0 + $0x70] sm:$0xff]
  %v26 = vld [vmem:[%s0 + $0x78] sm:$0xff]
  %v27 = vld [vmem:[%s0 + $0x80] sm:$0xff]
  %v28 = vld [vmem:[%s0 + $0x88] sm:$0xff]
  %v29 = vld [vmem:[%s0 + $0x90] sm:$0xff]
  %v30 = vld [vmem:[%s0 + $0x98] sm:$0xff]
  %v31 = vld [vmem:[%s0 + $0xa0] sm:$0xff]
  %v32 = vld [vmem:[%s0 + $0xa8] sm:$0xff]
  %v33 = vld [vmem:[%s0 + $0xb0] sm:$0xff]
  %v34 = vld [vmem:[%s0 + $0xb8] sm:$0xff]
  %v35 = vld [vmem:[%s0 + $0xc0] sm:$0xff]
  %v36 = vld [vmem:[%s0 + $0xc8] sm:$0xff]
  %v37 = vld [vmem:[%s0 + $0xd0] sm:$0xff]
  %v38 = vld [vmem:[%s0 + $0xd8] sm:$0xff]
  %v39 = vld [vmem:[%s0 + $0xe0] sm:$0xff]
  %v40 = vld [vmem:[%s0 + $0xe8] sm:$0xff]
  %v41 = vld [vmem:[%s0 + $0xf0] sm:$0xff]
  %v42 = vld [vmem:[%s0 + $0xf8] sm:$0xff]
  %v43 = vld [vmem:[%s0 + $0x100] sm:$0xff]
  %v44 = vld [vmem:[%s0 + $0x108] sm:$0xff]
  %v45 = vld [vmem:[%s0 + $0x110] sm:$0xff]
  %v46 = vld [vmem:[%s0 + $0x118] sm:$0xff]
  %v47 = vld [vmem:[%s0 + $0x120] sm:$0xff]
  %v48 = vld [vmem:[%s0 + $0x128] sm:$0xff]
  %v49 = vld [vmem:[%s0 + $0x130] sm:$0xff]
  %v50 = vld [vmem:[%s0 + $0x138] sm:$0xff]
  %v51 = vld [vmem:[%s0 + $0x140] sm:$0xff]
  %v52 = vld [vmem:[%s0 + $0x148] sm:$0xff]
  %v53 = vld [vmem:[%s0 + $0x150] sm:$0xff]
  %v54 = vld [vmem:[%s0 + $0x158] sm:$0xff]
  %v55 = vld [vmem:[%s0 + $0x160] sm:$0xff]
  %v56 = vld [vmem:[%s0 + $0x168] sm:$0xff]
  %v57 = vld [vmem:[%s0 + $0x170] sm:$0xff]
  %v58 = vld [vmem:[%s0 + $0x178] sm:$0xff]
  %v59 = vld [vmem:[%s0 + $0x180] sm:$0xff]
  %v60 = vld [vmem:[%s0 + $0x188] sm:$0xff]
  %v61 = vld [vmem:[%s0 + $0x190] sm:$0xff]
  %v62 = vld [vmem:[%s0 + $0x198] sm:$0xff]
  %v63 = vld [vmem:[%s0 + $0x1a0] sm:$0xff]
  %v64 = vld [vmem:[%s0 + $0x1a8] sm:$0xff]
  %v65 = vld [vmem:[%s0 + $0x1b0] sm:$0xff]
  %v66 = vld [vmem:[%s0 + $0x1b8] sm:$0xff]
  %v67 = vld [vmem:[%s0 + $0x1c0] sm:$0xff]
  %v68 = vld [vmem:[%s0 + $0x1c8] sm:$0xff]
  %v69 = vld [vmem:[%s0 + $0x1d0] sm:$0xff]
  %v70 = vld [vmem:[%s0 + $0x1d8] sm:$0xff]
  %v71 = vld [vmem:[%s0 + $0x1e0] sm:$0xff]
  %v72 = vld [vmem:[%s0 + $0x1e8] sm:$0xff]
  %v73 = vld [vmem:[%s0 + $0x1f0] sm:$0xff]
  %v74 = vld [vmem:[%s0 + $0x1f8] sm:$0xff]
  %v75 = vld [vmem:[%s1] sm:$0xff]
  %v76 = vld [vmem:[%s1 + $0x8] sm:$0xff]
  %77 = vmatprep.subr.mxu0 %v12
  %78 = vmatpush1.msra.mxu0 %v11
  %79 = vmatprep.subr.mxu0 %v16
  %80 = vmatpush1.msra.mxu0 %v15
  %81 = vmatprep.subr.mxu0 %v20
  %82 = vmatpush1.msra.mxu0 %v19
  %83 = vmatprep.subr.mxu0 %v24
  %84 = vmatpush1.msra.mxu0 %v23
  %85 = vmatprep.subr.mxu0 %v28
  %86 = vmatpush1.msra.mxu0 %v27
  %87 = vmatprep.subr.mxu0 %v32
  %88 = vmatpush1.msra.mxu0 %v31
  %89 = vmatprep.subr.mxu0 %v36
  %90 = vmatpush1.msra.mxu0 %v35
  %91 = vmatprep.subr.mxu0 %v40
  %92 = vmatpush1.msra.mxu0 %v39
  %93 = vmatprep.subr.mxu0 %v44
  %94 = vmatpush1.msra.mxu0 %v43
  %95 = vmatprep.subr.mxu0 %v48
  %96 = vmatpush1.msra.mxu0 %v47
  %97 = vmatprep.subr.mxu0 %v52
  %98 = vmatpush1.msra.mxu0 %v51
  %99 = vmatprep.subr.mxu0 %v56
  %100 = vmatpush1.msra.mxu0 %v55
  %101 = vmatprep.subr.mxu0 %v60
  %102 = vmatpush1.msra.mxu0 %v59
  %103 = vmatprep.subr.mxu0 %v64
  %104 = vmatpush1.msra.mxu0 %v63
  %105 = vmatprep.subr.mxu0 %v68
  %106 = vmatpush1.msra.mxu0 %v67
  %107 = vmatprep.subr.mxu0 %v72
  %108 = vmatpush1.msra.mxu0 %v71
  %109 = vmatprep.subr.mxu0 0.0
  %110 = vmatpush1.msra.mxu0 0.0
  %111 = vmatprep.subr.mxu0 0.0
  %112 = vmatpush1.msra.mxu0 0.0
  %113 = vmatprep.subr.mxu0 0.0
  %114 = vmatpush1.msra.mxu0 0.0
  %115 = vmatprep.subr.mxu0 0.0
  %116 = vmatpush1.msra.mxu0 0.0
  %117 = vmatprep.subr.mxu0 0.0
  %118 = vmatpush1.msra.mxu0 0.0
  %119 = vmatprep.subr.mxu0 0.0
  %120 = vmatpush1.msra.mxu0 0.0
  %121 = vmatprep.subr.mxu0 0.0
  %122 = vmatpush1.msra.mxu0 0.0
  %123 = vmatprep.subr.mxu0 0.0
  %124 = vmatpush1.msra.mxu0 0.0
  %125 = vmatprep.subr.mxu0 0.0
  %126 = vmatpush1.msra.mxu0 0.0
  %127 = vmatprep.subr.mxu0 0.0
  %128 = vmatpush1.msra.mxu0 0.0
  %129 = vmatprep.subr.mxu0 0.0
  %130 = vmatpush1.msra.mxu0 0.0
  %131 = vmatprep.subr.mxu0 0.0
  %132 = vmatpush1.msra.mxu0 0.0
  %133 = vmatprep.subr.mxu0 0.0
  %134 = vmatpush1.msra.mxu0 0.0
  %135 = vmatprep.subr.mxu0 0.0
  %136 = vmatpush1.msra.mxu0 0.0
  %137 = vmatprep.subr.mxu0 0.0
  %138 = vmatpush1.msra.mxu0 0.0
  %139 = vmatprep.subr.mxu0 0.0
  %140 = vmatpush1.msra.mxu0 0.0
  %141 = vmatprep.mubr.f32.mxu0 0.0
  %142 = vmatmul.mubr.f32.gmra.mrb[0].mxu0 %v75
  %v143 = vpop.f32.mrb[0].mxu0
  %v144 = vadd.f32 0.0, %v143
  %v145 = vpop.f32.mrb[0].mxu0
  %v146 = vadd.f32 0.0, %v145
  %147 = vmatprep.mubr.f32.mxu0 0.0
  %148 = vmatmul.mubr.f32.gmra.mrb[0].mxu0 %v76
  %v149 = vpop.f32.mrb[0].mxu0
  %v150 = vadd.f32 0.0, %v149
  %v151 = vpop.f32.mrb[0].mxu0
  %v152 = vadd.f32 0.0, %v151
  %153 = vdwg.mxu0
  %154 = vmatprep.subr.mxu0 %v14
  %155 = vmatpush1.msra.mxu0 %v13
  %156 = vmatprep.subr.mxu0 %v18
  %157 = vmatpush1.msra.mxu0 %v17
  %158 = vmatprep.subr.mxu0 %v22
  %159 = vmatpush1.msra.mxu0 %v21
  %160 = vmatprep.subr.mxu0 %v26
  %161 = vmatpush1.msra.mxu0 %v25
  %162 = vmatprep.subr.mxu0 %v30
  %163 = vmatpush1.msra.mxu0 %v29
  %164 = vmatprep.subr.mxu0 %v34
  %165 = vmatpush1.msra.mxu0 %v33
  %166 = vmatprep.subr.mxu0 %v38
  %167 = vmatpush1.msra.mxu0 %v37
  %168 = vmatprep.subr.mxu0 %v42
  %169 = vmatpush1.msra.mxu0 %v41
  %170 = vmatprep.subr.mxu0 %v46
  %171 = vmatpush1.msra.mxu0 %v45
  %172 = vmatprep.subr.mxu0 %v50
  %173 = vmatpush1.msra.mxu0 %v49
  %174 = vmatprep.subr.mxu0 %v54
  %175 = vmatpush1.msra.mxu0 %v53
  %176 = vmatprep.subr.mxu0 %v58
  %177 = vmatpush1.msra.mxu0 %v57
  %178 = vmatprep.subr.mxu0 %v62
  %179 = vmatpush1.msra.mxu0 %v61
  %180 = vmatprep.subr.mxu0 %v66
  %181 = vmatpush1.msra.mxu0 %v65
  %182 = vmatprep.subr.mxu0 %v70
  %183 = vmatpush1.msra.mxu0 %v69
  %184 = vmatprep.subr.mxu0 %v74
  %185 = vmatpush1.msra.mxu0 %v73
  %186 = vmatprep.subr.mxu0 0.0
  %187 = vmatpush1.msra.mxu0 0.0
  %188 = vmatprep.subr.mxu0 0.0
  %189 = vmatpush1.msra.mxu0 0.0
  %190 = vmatprep.subr.mxu0 0.0
  %191 = vmatpush1.msra.mxu0 0.0
  %192 = vmatprep.subr.mxu0 0.0
  %193 = vmatpush1.msra.mxu0 0.0
  %194 = vmatprep.subr.mxu0 0.0
  %195 = vmatpush1.msra.mxu0 0.0
  %196 = vmatprep.subr.mxu0 0.0
  %197 = vmatpush1.msra.mxu0 0.0
  %198 = vmatprep.subr.mxu0 0.0
  %199 = vmatpush1.msra.mxu0 0.0
  %200 = vmatprep.subr.mxu0 0.0
  %201 = vmatpush1.msra.mxu0 0.0
  %202 = vmatprep.subr.mxu0 0.0
  %203 = vmatpush1.msra.mxu0 0.0
  %204 = vmatprep.subr.mxu0 0.0
  %205 = vmatpush1.msra.mxu0 0.0
  %206 = vmatprep.subr.mxu0 0.0
  %207 = vmatpush1.msra.mxu0 0.0
  %208 = vmatprep.subr.mxu0 0.0
  %209 = vmatpush1.msra.mxu0 0.0
  %210 = vmatprep.subr.mxu0 0.0
  %211 = vmatpush1.msra.mxu0 0.0
  %212 = vmatprep.subr.mxu0 0.0
  %213 = vmatpush1.msra.mxu0 0.0
  %214 = vmatprep.subr.mxu0 0.0
  %215 = vmatpush1.msra.mxu0 0.0
  %216 = vmatprep.subr.mxu0 0.0
  %217 = vmatpush1.msra.mxu0 0.0
  %218 = vmatprep.mubr.f32.mxu0 0.0
  %219 = vmatmul.mubr.f32.gmra.mrb[0].mxu0 %v75
  %v220 = vpop.f32.mrb[0].mxu0
  %v221 = vadd.f32 0.0, %v220
  %v222 = vpop.f32.mrb[0].mxu0
  %v223 = vadd.f32 0.0, %v222
  %224 = vmatprep.mubr.f32.mxu0 0.0
  %225 = vmatmul.mubr.f32.gmra.mrb[0].mxu0 %v76
  %v226 = vpop.f32.mrb[0].mxu0
  %v227 = vadd.f32 0.0, %v226
  %v228 = vpop.f32.mrb[0].mxu0
  %v229 = vadd.f32 0.0, %v228
  %230 = vdwg.mxu0
  %231 = vst [vmem:[%s2] sm:$0xff] %v144
  %232 = vst [vmem:[%s2 + $0x8] sm:$0xff] %v146
  %233 = vst [vmem:[%s2 + $0x10] sm:$0xff] %v221
  %234 = vst [vmem:[%s2 + $0x18] sm:$0xff] %v223
  %235 = vst [vmem:[%s2 + $0x20] sm:$0xff] %v150
  %236 = vst [vmem:[%s2 + $0x28] sm:$0xff] %v152
  %237 = vst [vmem:[%s2 + $0x30] sm:$0xff] %v227
  %238 = vst [vmem:[%s2 + $0x38] sm:$0xff] %v229
  // Predicated region
  $region10: #{unpool.1} parent=0 // pred_check
    _
  $region11: #{unpool.1} parent=0 // pred_check_branch
    %240 = sbr.rel (0) target = $region13
  $region12: #{unpool.1} parent=0 // pred_region
    _
  $region13: #{unpool.1} parent=0 // pred_fallthru
    _
  // Predicated region
  $region14: #{unpool.1} parent=0 // pred_check
    _
  $region15: #{unpool.1} parent=0 // pred_check_branch
    %242 = sbr.rel (0) target = $region17
  $region16: #{unpool.1} parent=0 // pred_region
    _
  $region17: #{unpool.1} parent=0 // pred_fallthru
    _

</llo_original>
